<compile_context>
chip_gen: v7x
topology: tpu7x:2x2x1
jax: 0.10.0
libtpu: 0.0.40
codegen_flags: <defaults>
</compile_context>

<pallas_src>
import jax
import jax.numpy as jnp
from jax.experimental import pallas as pl
from jax.experimental.pallas import tpu as pltpu


def _round_up(x, m):
    return (x + m - 1) // m * m


def _disc_kernel(z_ref, w1_ref, b1_ref, w2_ref, b2_ref, w3r_ref, b3_ref, o_ref):
    # ---- linear1 + ReLU (dropout = identity in eval mode) ----
    # bf16 x bf16 -> f32 accumulate on the MXU.
    h1 = jnp.dot(z_ref[...], w1_ref[...], preferred_element_type=jnp.float32)
    h1 = jnp.maximum(h1 + b1_ref[...], 0.0)
    # TODO(synk): training-mode dropout (p=0.2) could be added with
    # pltpu.prng_seed / pltpu.stateful_bernoulli; eval-mode forward is identity.

    # ---- linear2 + ReLU ----
    h2 = jnp.dot(h1.astype(jnp.bfloat16), w2_ref[...],
                 preferred_element_type=jnp.float32)
    h2 = jnp.maximum(h2 + b2_ref[...], 0.0)

    # ---- linear3 + Sigmoid ----
    # [TB,128] x [1,128] broadcast-mul (VPU) + lane reduce (XLU): avoids a
    # degenerate N=1 MXU pass and keeps full f32 precision on the last layer.
    logits = jnp.sum(h2 * w3r_ref[...], axis=-1, keepdims=True) + b3_ref[...]
    o_ref[...] = jax.nn.sigmoid(logits).astype(o_ref.dtype)


def discriminator4_forward(z, params, *, block_b=256):
    """z: [B, latent_size] float32 -> [B, 1] float32."""
    w1, b1, w2, b2, w3, b3 = (
        params["w1"], params["b1"],
        params["w2"], params["b2"],
        params["w3"], params["b3"],
    )
    B, L = z.shape
    assert w1.shape[0] == L and w1.shape[1] == 256
    assert w2.shape == (256, 128) and w3.shape == (128, 1)

    # Alignment / tiling choices.
    Lp = _round_up(L, 128)                 # MXU/lane-friendly K dimension
    TB = min(block_b, _round_up(B, 8))     # batch tile (multiple of 8)
    Bp = _round_up(B, TB)                  # padded batch

    # One-time wrapper-side padding + bf16 casts (zero rows/cols contribute 0).
    z_p = jnp.zeros((Bp, Lp), jnp.bfloat16).at[:B, :L].set(z.astype(jnp.bfloat16))
    w1_p = jnp.zeros((Lp, 256), jnp.bfloat16).at[:L, :].set(w1.astype(jnp.bfloat16))
    w2_b = w2.astype(jnp.bfloat16)
    w3_row = w3.reshape(1, 128).astype(jnp.float32)   # last layer stays f32 (VPU)
    b1_ = b1.reshape(1, 256).astype(jnp.float32)
    b2_ = b2.reshape(1, 128).astype(jnp.float32)
    b3_ = b3.reshape(1, 1).astype(jnp.float32)

    grid = (pl.cdiv(Bp, TB),)
    const = lambda i: (0, 0)   # weights/biases: VMEM-resident across the grid

    out = pl.pallas_call(
        _disc_kernel,
        out_shape=jax.ShapeDtypeStruct((Bp, 1), jnp.float32),
        grid=grid,
        in_specs=[
            pl.BlockSpec((TB, Lp), lambda i: (i, 0)),   # z tile (pipelined)
            pl.BlockSpec((Lp, 256), const),             # w1
            pl.BlockSpec((1, 256), const),              # b1
            pl.BlockSpec((256, 128), const),            # w2
            pl.BlockSpec((1, 128), const),              # b2
            pl.BlockSpec((1, 128), const),              # w3 (as a row)
            pl.BlockSpec((1, 1), const),                # b3
        ],
        out_specs=pl.BlockSpec((TB, 1), lambda i: (i, 0)),
        compiler_params=pltpu.CompilerParams(
            dimension_semantics=("parallel",),   # 2x on v7x's two TCs
            vmem_limit_bytes=8 << 20,            # real footprint << 1 MiB
        ),
    )(z_p, w1_p, b1_, w2_b, b2_, w3_row, b3_)

    return out[:B]


def init_params(key, latent_size):
    # Deterministic synthetic init (mimics utils.init_weights ~ N(0, 0.02)).
    ks = jax.random.split(key, 3)
    scale = 0.02
    w1 = scale * jax.random.normal(ks[0], (latent_size, 256), jnp.float32)
    b1 = jnp.zeros((1, 256), jnp.float32)
    w2 = scale * jax.random.normal(ks[1], (256, 128), jnp.float32)
    b2 = jnp.zeros((1, 128), jnp.float32)
    w3 = scale * jax.random.normal(ks[2], (128, 1), jnp.float32)
    b3 = jnp.zeros((1, 1), jnp.float32)
    return dict(w1=w1, b1=b1, w2=w2, b2=b2, w3=w3, b3=b3)


if __name__ == "__main__":
    key = jax.random.PRNGKey(0)
    k_in, k_par = jax.random.split(key)

    B = 8            # batch
    LATENT = 32      # small latent_size for the example (module default is 100)

    z = jax.random.normal(k_in, (B, LATENT), jnp.float32)
    params = init_params(k_par, LATENT)

    out = discriminator4_forward(z, params)
    out = jax.block_until_ready(out)

    # Pure-JAX f32 reference check (same eval-mode semantics).  The kernel
    # uses bf16 MXU inputs with f32 accumulation, so allow bf16-level error.
    h1 = jnp.maximum(z @ params["w1"] + params["b1"], 0.0)
    h2 = jnp.maximum(h1 @ params["w2"] + params["b2"], 0.0)
    ref = jax.nn.sigmoid(h2 @ params["w3"] + params["b3"])
    assert out.shape == (B, 1)
    assert jnp.allclose(out, ref, atol=2e-2, rtol=2e-2), (
        f"max abs err {jnp.max(jnp.abs(out - ref))}")

    print("KERNEL_OK")
</pallas_src>

<mosaic_0001>
module attributes {stable_mosaic.version = 11 : i64} {
  func.func @_disc_kernel(%arg0: i32, %arg1: memref<8x128xbf16, #tpu.memory_space<vmem>>, %arg2: memref<128x256xbf16, #tpu.memory_space<vmem>>, %arg3: memref<1x256xf32, #tpu.memory_space<vmem>>, %arg4: memref<256x128xbf16, #tpu.memory_space<vmem>>, %arg5: memref<1x128xf32, #tpu.memory_space<vmem>>, %arg6: memref<1x128xf32, #tpu.memory_space<vmem>>, %arg7: memref<1x1xf32, #tpu.memory_space<vmem>>, %arg8: memref<8x1xf32, #tpu.memory_space<vmem>>) attributes {dimension_semantics = [#tpu.dimension_semantics<parallel>], iteration_bounds = array<i64: 1>, scalar_prefetch = 0 : i64, scratch_operands = 0 : i64, tpu.core_type = #tpu.core_type<tc>, window_params = [{transform_indices = @transform_0, window_bounds = array<i64: 8, 128>}, {pipeline_mode = #tpu.pipeline_mode<synchronous>, transform_indices = @transform_1, window_bounds = array<i64: 128, 256>}, {pipeline_mode = #tpu.pipeline_mode<synchronous>, transform_indices = @transform_2, window_bounds = array<i64: 1, 256>}, {pipeline_mode = #tpu.pipeline_mode<synchronous>, transform_indices = @transform_3, window_bounds = array<i64: 256, 128>}, {pipeline_mode = #tpu.pipeline_mode<synchronous>, transform_indices = @transform_4, window_bounds = array<i64: 1, 128>}, {pipeline_mode = #tpu.pipeline_mode<synchronous>, transform_indices = @transform_5, window_bounds = array<i64: 1, 128>}, {pipeline_mode = #tpu.pipeline_mode<synchronous>, transform_indices = @transform_6, window_bounds = array<i64: 1, 1>}, {transform_indices = @transform_7, window_bounds = array<i64: 8, 1>}]} {
    %c0 = arith.constant 0 : index
    %c0_0 = arith.constant 0 : index
    %0 = vector.load %arg1[%c0, %c0_0] : memref<8x128xbf16, #tpu.memory_space<vmem>>, vector<8x128xbf16>
    %c0_1 = arith.constant 0 : index
    %c0_2 = arith.constant 0 : index
    %1 = vector.load %arg2[%c0_1, %c0_2] : memref<128x256xbf16, #tpu.memory_space<vmem>>, vector<128x256xbf16>
    %cst = arith.constant dense<0.000000e+00> : vector<8x256xf32>
    %2 = tpu.matmul %0, %1, %cst {dimension_numbers = #tpu.dot_dimension_numbers<[1], [0], [0], [1], [0, 0, 1, 1], [], []>} : vector<8x128xbf16>, vector<128x256xbf16>, vector<8x256xf32> -> vector<8x256xf32>
    %c0_3 = arith.constant 0 : index
    %c0_4 = arith.constant 0 : index
    %3 = vector.load %arg3[%c0_3, %c0_4] : memref<1x256xf32, #tpu.memory_space<vmem>>, vector<1x256xf32>
    %4 = vector.broadcast %3 : vector<1x256xf32> to vector<8x256xf32>
    %5 = arith.addf %2, %4 : vector<8x256xf32>
    %cst_5 = arith.constant 0.000000e+00 : f32
    %6 = vector.broadcast %cst_5 : f32 to vector<8x256xf32>
    %7 = arith.maximumf %5, %6 : vector<8x256xf32>
    %8 = arith.truncf %7 : vector<8x256xf32> to vector<8x256xbf16>
    %c0_6 = arith.constant 0 : index
    %c0_7 = arith.constant 0 : index
    %9 = vector.load %arg4[%c0_6, %c0_7] : memref<256x128xbf16, #tpu.memory_space<vmem>>, vector<256x128xbf16>
    %cst_8 = arith.constant dense<0.000000e+00> : vector<8x128xf32>
    %10 = tpu.matmul %8, %9, %cst_8 {dimension_numbers = #tpu.dot_dimension_numbers<[1], [0], [0], [1], [0, 0, 1, 1], [], []>} : vector<8x256xbf16>, vector<256x128xbf16>, vector<8x128xf32> -> vector<8x128xf32>
    %c0_9 = arith.constant 0 : index
    %c0_10 = arith.constant 0 : index
    %11 = vector.load %arg5[%c0_9, %c0_10] : memref<1x128xf32, #tpu.memory_space<vmem>>, vector<1x128xf32>
    %12 = vector.broadcast %11 : vector<1x128xf32> to vector<8x128xf32>
    %13 = arith.addf %10, %12 : vector<8x128xf32>
    %cst_11 = arith.constant 0.000000e+00 : f32
    %14 = vector.broadcast %cst_11 : f32 to vector<8x128xf32>
    %15 = arith.maximumf %13, %14 : vector<8x128xf32>
    %c0_12 = arith.constant 0 : index
    %c0_13 = arith.constant 0 : index
    %16 = vector.load %arg6[%c0_12, %c0_13] : memref<1x128xf32, #tpu.memory_space<vmem>>, vector<1x128xf32>
    %17 = vector.broadcast %16 : vector<1x128xf32> to vector<8x128xf32>
    %18 = arith.mulf %15, %17 : vector<8x128xf32>
    %cst_14 = arith.constant dense<0.000000e+00> : vector<8xf32>
    %19 = vector.multi_reduction <add>, %18, %cst_14 [1] : vector<8x128xf32> to vector<8xf32>
    %20 = vector.shape_cast %19 : vector<8xf32> to vector<8x1xf32>
    %c0_15 = arith.constant 0 : index
    %c0_16 = arith.constant 0 : index
    %21 = vector.load %arg7[%c0_15, %c0_16] : memref<1x1xf32, #tpu.memory_space<vmem>>, vector<1x1xf32>
    %22 = vector.broadcast %21 : vector<1x1xf32> to vector<8x1xf32>
    %23 = arith.addf %20, %22 : vector<8x1xf32>
    %24 = arith.negf %23 : vector<8x1xf32>
    %25 = math.exp %24 : vector<8x1xf32>
    %cst_17 = arith.constant 1.000000e+00 : f32
    %26 = vector.broadcast %cst_17 : f32 to vector<8x1xf32>
    %27 = arith.addf %26, %25 : vector<8x1xf32>
    %28 = arith.divf %26, %27 : vector<8x1xf32>
    %c0_18 = arith.constant 0 : index
    %c0_19 = arith.constant 0 : index
    %29 = vector.load %arg8[%c0_18, %c0_19] : memref<8x1xf32, #tpu.memory_space<vmem>>, vector<8x1xf32>
    tpu.vector_store %arg8[%c0_18, %c0_19], %28 {strides = array<i32>} : memref<8x1xf32, #tpu.memory_space<vmem>>, vector<8x1xf32>,
    return
  }
  func.func @transform_0(%arg0: i32) -> (i32, i32) {
    %c0_i32 = arith.constant 0 : i32
    %c0_i32_0 = arith.constant 0 : i32
    return %arg0, %c0_i32 : i32, i32
  }
  func.func @transform_1(%arg0: i32) -> (i32, i32) {
    %c0_i32 = arith.constant 0 : i32
    %c0_i32_0 = arith.constant 0 : i32
    %c0_i32_1 = arith.constant 0 : i32
    return %c0_i32, %c0_i32_0 : i32, i32
  }
  func.func @transform_2(%arg0: i32) -> (i32, i32) {
    %c0_i32 = arith.constant 0 : i32
    %c0_i32_0 = arith.constant 0 : i32
    %c0_i32_1 = arith.constant 0 : i32
    return %c0_i32, %c0_i32_0 : i32, i32
  }
  func.func @transform_3(%arg0: i32) -> (i32, i32) {
    %c0_i32 = arith.constant 0 : i32
    %c0_i32_0 = arith.constant 0 : i32
    %c0_i32_1 = arith.constant 0 : i32
    return %c0_i32, %c0_i32_0 : i32, i32
  }
  func.func @transform_4(%arg0: i32) -> (i32, i32) {
    %c0_i32 = arith.constant 0 : i32
    %c0_i32_0 = arith.constant 0 : i32
    %c0_i32_1 = arith.constant 0 : i32
    return %c0_i32, %c0_i32_0 : i32, i32
  }
  func.func @transform_5(%arg0: i32) -> (i32, i32) {
    %c0_i32 = arith.constant 0 : i32
    %c0_i32_0 = arith.constant 0 : i32
    %c0_i32_1 = arith.constant 0 : i32
    return %c0_i32, %c0_i32_0 : i32, i32
  }
  func.func @transform_6(%arg0: i32) -> (i32, i32) {
    %c0_i32 = arith.constant 0 : i32
    %c0_i32_0 = arith.constant 0 : i32
    %c0_i32_1 = arith.constant 0 : i32
    return %c0_i32, %c0_i32_0 : i32, i32
  }
  func.func @transform_7(%arg0: i32) -> (i32, i32) {
    %c0_i32 = arith.constant 0 : i32
    %c0_i32_0 = arith.constant 0 : i32
    return %arg0, %c0_i32 : i32, i32
  }
}

</mosaic_0001>

<llo_original>
// kernel: tpu_custom_call.1
$region0: #{tpu_custom_call.1}
  #allocation0 [shape = 'u32[]', space=smem, size = 0x4, offset = 0x4, fixed_abs, tag = 'smem constant byte address 0x4 - core index']
  #allocation1 [shape = 'u32[144,128]{1,0:T(1,128)}', space=vmem, size = 0x12000, scoped, tag = 'internal scratch']
  #allocation2 [shape = 'f32[1,1]{1,0:T(1,128)S(1)}', space=vmem, size = 0x200, scoped, tag = 'scoped memory for tpu_custom_call.1']
  %s0 = inlined_call_operand.hbm [shape: bf16[8,128], index: 0, kind: input, shape index: {}]
  %s1 = inlined_call_operand.hbm [shape: bf16[128,256], index: 1, kind: input, shape index: {}]
  %s2 = inlined_call_operand.vmem [shape: f32[1,256], index: 2, kind: input, shape index: {}]
  %s3 = inlined_call_operand.hbm [shape: bf16[256,128], index: 3, kind: input, shape index: {}]
  %s4 = inlined_call_operand.vmem [shape: f32[1,128], index: 4, kind: input, shape index: {}]
  %s5 = inlined_call_operand.vmem [shape: f32[1,128], index: 5, kind: input, shape index: {}]
  %s6 = inlined_call_operand.<no memory space> [shape: f32[1,1], index: 6, kind: input, shape index: {}]
  %s7 = inlined_call_operand.vmem [shape: f32[8,1], index: 7, kind: output, shape index: {}]
  %s8 = sld [smem:[#allocation0]]
  $region50: #{tpu_custom_call.1} parent=0
    _
  %s10 = ssub.s32 1, %s8
  %s11 = scalar_select 0, %s10, %s8
  %v12 = vstv %s6
  %13 = vst [vmem:[#allocation2] sm:$0x1] %v12
  $region1: #{tpu_custom_call.1} parent=0
    #allocation3 [shape = 'u8[2048]{0}', space=vmem, size = 0x800, scoped, tag = 'input window, operand 0, single buffered']
    #allocation4 [shape = 's32[1]{0}', space=sflag, size = 0x4, scoped, tag = 'scoped memory for tpu_custom_call.1']
    #allocation5 [shape = 'u8[65536]{0}', space=vmem, size = 0x10000, scoped, tag = 'input window, operand 1, single buffered']
    #allocation6 [shape = 's32[1]{0}', space=sflag, size = 0x4, scoped, tag = 'scoped memory for tpu_custom_call.1']
    #allocation7 [shape = 'u8[65536]{0}', space=vmem, size = 0x10000, scoped, tag = 'input window, operand 3, single buffered']
    %14 = vsyncpa [#allocation4], 0
    %15 = vsyncpa [#allocation6], 0
    // Predicated region
    $region2: #{tpu_custom_call.1} parent=1 // pred_check
      _
    $region3: #{tpu_custom_call.1} parent=1 // pred_check_branch
      %17 = sbr.rel (0) target = $region5
    $region4: #{tpu_custom_call.1} parent=1 // pred_region
      %s19 = ssub.s32 64, 64
      %20 = vsyncadd [#allocation4], %s19
      %s22 = sshll.u32 [#allocation3], 4
      %s23 = int_to_ptr.vmem [resolvable:$true] %s22
      %25 = dma.hbm_to_vmem [thread:$0]  %s0, 64, %s23, [#allocation4]
    $region5: #{tpu_custom_call.1} parent=1 // pred_fallthru
      _
    // Predicated region
    $region6: #{tpu_custom_call.1} parent=1 // pred_check
      _
    $region7: #{tpu_custom_call.1} parent=1 // pred_check_branch
      %27 = sbr.rel (0) target = $region9
    $region8: #{tpu_custom_call.1} parent=1 // pred_region
      %s29 = ssub.s32 2048, 2048
      %30 = vsyncadd [#allocation6], %s29
      %s31 = sshll.u32 [#allocation5], 4
      %s32 = int_to_ptr.vmem [resolvable:$true] %s31
      %37 = dma.hbm_to_vmem [thread:$0]  %s1, 2048, %s32, [#allocation6], 128, 128, 8
    $region9: #{tpu_custom_call.1} parent=1 // pred_fallthru
      _
    // Predicated region
    $region10: #{tpu_custom_call.1} parent=1 // pred_check
      _
    $region11: #{tpu_custom_call.1} parent=1 // pred_check_branch
      %39 = sbr.rel (0) target = $region13
    $region12: #{tpu_custom_call.1} parent=1 // pred_region
      _
    $region13: #{tpu_custom_call.1} parent=1 // pred_fallthru
      _
    // Predicated region
    $region14: #{tpu_custom_call.1} parent=1 // pred_check
      _
    $region15: #{tpu_custom_call.1} parent=1 // pred_check_branch
      %41 = sbr.rel (0) target = $region17
    $region16: #{tpu_custom_call.1} parent=1 // pred_region
      %s43 = ssub.s32 2048, 2048
      %44 = vsyncadd [#allocation6], %s43
      %s45 = sshll.u32 [#allocation7], 4
      %s46 = int_to_ptr.vmem [resolvable:$true] %s45
      %51 = dma.hbm_to_vmem [thread:$0]  %s3, 2048, %s46, [#allocation6], 64, 64, 4
    $region17: #{tpu_custom_call.1} parent=1 // pred_fallthru
      _
    // Predicated region
    $region18: #{tpu_custom_call.1} parent=1 // pred_check
      _
    $region19: #{tpu_custom_call.1} parent=1 // pred_check_branch
      %53 = sbr.rel (0) target = $region21
    $region20: #{tpu_custom_call.1} parent=1 // pred_region
      _
    $region21: #{tpu_custom_call.1} parent=1 // pred_fallthru
      _
    // Predicated region
    $region22: #{tpu_custom_call.1} parent=1 // pred_check
      _
    $region23: #{tpu_custom_call.1} parent=1 // pred_check_branch
      %55 = sbr.rel (0) target = $region25
    $region24: #{tpu_custom_call.1} parent=1 // pred_region
      _
    $region25: #{tpu_custom_call.1} parent=1 // pred_fallthru
      _
    // Predicated region
    $region26: #{tpu_custom_call.1} parent=1 // pred_check
      _
    $region27: #{tpu_custom_call.1} parent=1 // pred_check_branch
      %57 = sbr.rel (0) target = $region29
    $region28: #{tpu_custom_call.1} parent=1 // pred_region
      _
    $region29: #{tpu_custom_call.1} parent=1 // pred_fallthru
      _
    // Predicated region
    $region30: #{tpu_custom_call.1} parent=1 // pred_check
      _
    $region31: #{tpu_custom_call.1} parent=1 // pred_check_branch
      %59 = sbr.rel (0) target = $region33
    $region32: #{tpu_custom_call.1} parent=1 // pred_region
      %60 = dma.done [#allocation4], 64
    $region33: #{tpu_custom_call.1} parent=1 // pred_fallthru
      _
    // Predicated region
    $region34: #{tpu_custom_call.1} parent=1 // pred_check
      _
    $region35: #{tpu_custom_call.1} parent=1 // pred_check_branch
      %62 = sbr.rel (0) target = $region37
    $region36: #{tpu_custom_call.1} parent=1 // pred_region
      %63 = dma.done [#allocation6], 2048
    $region37: #{tpu_custom_call.1} parent=1 // pred_fallthru
      _
    // Predicated region
    $region38: #{tpu_custom_call.1} parent=1 // pred_check
      _
    $region39: #{tpu_custom_call.1} parent=1 // pred_check_branch
      %65 = sbr.rel (0) target = $region41
    $region40: #{tpu_custom_call.1} parent=1 // pred_region
      %66 = dma.done [#allocation6], 2048
    $region41: #{tpu_custom_call.1} parent=1 // pred_fallthru
      _
    %v68 = vld [vmem:[#allocation3] sm:$0xf]
    %v69 = vld [vmem:[#allocation5] sm:$0xff]
    %v70 = vld [vmem:[#allocation5 + $0x8] sm:$0xff]
    %v71 = vld [vmem:[#allocation5 + $0x10] sm:$0xff]
    %v72 = vld [vmem:[#allocation5 + $0x18] sm:$0xff]
    %v73 = vld [vmem:[#allocation5 + $0x20] sm:$0xff]
    %v74 = vld [vmem:[#allocation5 + $0x28] sm:$0xff]
    %v75 = vld [vmem:[#allocation5 + $0x30] sm:$0xff]
    %v76 = vld [vmem:[#allocation5 + $0x38] sm:$0xff]
    %v77 = vld [vmem:[#allocation5 + $0x40] sm:$0xff]
    %v78 = vld [vmem:[#allocation5 + $0x48] sm:$0xff]
    %v79 = vld [vmem:[#allocation5 + $0x50] sm:$0xff]
    %v80 = vld [vmem:[#allocation5 + $0x58] sm:$0xff]
    %v81 = vld [vmem:[#allocation5 + $0x60] sm:$0xff]
    %v82 = vld [vmem:[#allocation5 + $0x68] sm:$0xff]
    %v83 = vld [vmem:[#allocation5 + $0x70] sm:$0xff]
    %v84 = vld [vmem:[#allocation5 + $0x78] sm:$0xff]
    %v85 = vld [vmem:[%s2] sm:$0x3]
    %v87 = vlaneseq
    %v88 = vshrl.u32 %v87, 7
    %v89 = vsub.s32 0, %v88
    %v90 = vrot.slane %v85, %v89
    %v91 = vlaneseq
    %v92 = vshrl.u32 %v91, 7
    %v93 = vsub.s32 1, %v92
    %v94 = vrot.slane %v85, %v93
    %v113 = vunpack.c.l.b16 %v69
    %v114 = vunpack.c.h.b16 %v69
    %v115 = vunpack.c.l.b16 %v70
    %v116 = vunpack.c.h.b16 %v70
    %v117 = vunpack.c.l.b16 %v71
    %v118 = vunpack.c.h.b16 %v71
    %v119 = vunpack.c.l.b16 %v72
    %v120 = vunpack.c.h.b16 %v72
    %v121 = vunpack.c.l.b16 %v73
    %v122 = vunpack.c.h.b16 %v73
    %v123 = vunpack.c.l.b16 %v74
    %v124 = vunpack.c.h.b16 %v74
    %v125 = vunpack.c.l.b16 %v75
    %v126 = vunpack.c.h.b16 %v75
    %v127 = vunpack.c.l.b16 %v76
    %v128 = vunpack.c.h.b16 %v76
    %v129 = vunpack.c.l.b16 %v77
    %v130 = vunpack.c.h.b16 %v77
    %v131 = vunpack.c.l.b16 %v78
    %v132 = vunpack.c.h.b16 %v78
    %v133 = vunpack.c.l.b16 %v79
    %v134 = vunpack.c.h.b16 %v79
    %v135 = vunpack.c.l.b16 %v80
    %v136 = vunpack.c.h.b16 %v80
    %v137 = vunpack.c.l.b16 %v81
    %v138 = vunpack.c.h.b16 %v81
    %v139 = vunpack.c.l.b16 %v82
    %v140 = vunpack.c.h.b16 %v82
    %v141 = vunpack.c.l.b16 %v83
    %v142 = vunpack.c.h.b16 %v83
    %v143 = vunpack.c.l.b16 %v84
    %v144 = vunpack.c.h.b16 %v84
    %v145 = vpack.c.b16 %v115, %v113
    %v146 = vpack.c.b16 %v116, %v114
    %v147 = vpack.c.b16 %v119, %v117
    %v148 = vpack.c.b16 %v120, %v118
    %v149 = vpack.c.b16 %v123, %v121
    %v150 = vpack.c.b16 %v124, %v122
    %v151 = vpack.c.b16 %v127, %v125
    %v152 = vpack.c.b16 %v128, %v126
    %v153 = vpack.c.b16 %v131, %v129
    %v154 = vpack.c.b16 %v132, %v130
    %v155 = vpack.c.b16 %v135, %v133
    %v156 = vpack.c.b16 %v136, %v134
    %v157 = vpack.c.b16 %v139, %v137
    %v158 = vpack.c.b16 %v140, %v138
    %v159 = vpack.c.b16 %v143, %v141
    %v160 = vpack.c.b16 %v144, %v142
    %177 = vmatprep.subr.bf16.mxu0 %v146
    %178 = vmatpush1.bf16.msra.mxu0 %v145
    %179 = vmatprep.subr.bf16.mxu0 %v148
    %180 = vmatpush1.bf16.msra.mxu0 %v147
    %181 = vmatprep.subr.bf16.mxu0 %v150
    %182 = vmatpush1.bf16.msra.mxu0 %v149
    %183 = vmatprep.subr.bf16.mxu0 %v152
    %184 = vmatpush1.bf16.msra.mxu0 %v151
    %185 = vmatprep.subr.bf16.mxu0 %v154
    %186 = vmatpush1.bf16.msra.mxu0 %v153
    %187 = vmatprep.subr.bf16.mxu0 %v156
    %188 = vmatpush1.bf16.msra.mxu0 %v155
    %189 = vmatprep.subr.bf16.mxu0 %v158
    %190 = vmatpush1.bf16.msra.mxu0 %v157
    %191 = vmatprep.subr.bf16.mxu0 %v160
    %192 = vmatpush1.bf16.msra.mxu0 %v159
    %193 = vmatprep.subr.bf16.mxu0 0
    %194 = vmatpush1.bf16.msra.mxu0 0
    %195 = vmatprep.subr.bf16.mxu0 0
    %196 = vmatpush1.bf16.msra.mxu0 0
    %197 = vmatprep.subr.bf16.mxu0 0
    %198 = vmatpush1.bf16.msra.mxu0 0
    %199 = vmatprep.subr.bf16.mxu0 0
    %200 = vmatpush1.bf16.msra.mxu0 0
    %201 = vmatprep.subr.bf16.mxu0 0
    %202 = vmatpush1.bf16.msra.mxu0 0
    %203 = vmatprep.subr.bf16.mxu0 0
    %204 = vmatpush1.bf16.msra.mxu0 0
    %205 = vmatprep.subr.bf16.mxu0 0
    %206 = vmatpush1.bf16.msra.mxu0 0
    %207 = vmatprep.subr.bf16.mxu0 0
    %208 = vmatpush1.bf16.msra.mxu0 0
    %209 = vmatprep.mubr.bf16.mxu0 0
    %210 = vmatmul.mubr.bf16.gmra.mrb[0].mxu0 %v68
    %v211 = vpop.f32.mrb[0].mxu0
    %v212 = vadd.f32 %v90, %v211
    %v213 = vpop.f32.mrb[0].mxu0
    %v214 = vadd.f32 %v94, %v213
    %v215 = vpop.f32.mrb[0].mxu0
    %v216 = vpop.f32.mrb[0].mxu0
    %217 = vdwg.mxu0
    %v218 = vmax.f32 %v212, 0.0
    %v219 = vmax.f32 %v214, 0.0
    %v220 = vpack.c.bf16 %v218, %v218
    %v221 = vpack.c.bf16 %v219, %v219
    %v222 = vld [vmem:[#allocation7] sm:$0xf]
    %v223 = vld [vmem:[#allocation7 + $0x4] sm:$0xf]
    %v224 = vld [vmem:[#allocation7 + $0x8] sm:$0xf]
    %v225 = vld [vmem:[#allocation7 + $0xc] sm:$0xf]
    %v226 = vld [vmem:[#allocation7 + $0x10] sm:$0xf]
    %v227 = vld [vmem:[#allocation7 + $0x14] sm:$0xf]
    %v228 = vld [vmem:[#allocation7 + $0x18] sm:$0xf]
    %v229 = vld [vmem:[#allocation7 + $0x1c] sm:$0xf]
    %v230 = vld [vmem:[#allocation7 + $0x20] sm:$0xf]
    %v231 = vld [vmem:[#allocation7 + $0x24] sm:$0xf]
    %v232 = vld [vmem:[#allocation7 + $0x28] sm:$0xf]
    %v233 = vld [vmem:[#allocation7 + $0x2c] sm:$0xf]
    %v234 = vld [vmem:[#allocation7 + $0x30] sm:$0xf]
    %v235 = vld [vmem:[#allocation7 + $0x34] sm:$0xf]
    %v236 = vld [vmem:[#allocation7 + $0x38] sm:$0xf]
    %v237 = vld [vmem:[#allocation7 + $0x3c] sm:$0xf]
    %v238 = vld [vmem:[#allocation7 + $0x40] sm:$0xf]
    %v239 = vld [vmem:[#allocation7 + $0x44] sm:$0xf]
    %v240 = vld [vmem:[#allocation7 + $0x48] sm:$0xf]
    %v241 = vld [vmem:[#allocation7 + $0x4c] sm:$0xf]
    %v242 = vld [vmem:[#allocation7 + $0x50] sm:$0xf]
    %v243 = vld [vmem:[#allocation7 + $0x54] sm:$0xf]
    %v244 = vld [vmem:[#allocation7 + $0x58] sm:$0xf]
    %v245 = vld [vmem:[#allocation7 + $0x5c] sm:$0xf]
    %v246 = vld [vmem:[#allocation7 + $0x60] sm:$0xf]
    %v247 = vld [vmem:[#allocation7 + $0x64] sm:$0xf]
    %v248 = vld [vmem:[#allocation7 + $0x68] sm:$0xf]
    %v249 = vld [vmem:[#allocation7 + $0x6c] sm:$0xf]
    %v250 = vld [vmem:[#allocation7 + $0x70] sm:$0xf]
    %v251 = vld [vmem:[#allocation7 + $0x74] sm:$0xf]
    %v252 = vld [vmem:[#allocation7 + $0x78] sm:$0xf]
    %v253 = vld [vmem:[#allocation7 + $0x7c] sm:$0xf]
    %v254 = vld [vmem:[%s4] sm:$0x1]
    %v256 = vlaneseq
    %v257 = vshrl.u32 %v256, 7
    %v258 = vsub.s32 0, %v257
    %v259 = vrot.slane %v254, %v258
    %v293 = vunpack.c.l.b16 %v222
    %v294 = vunpack.c.l.b16 %v223
    %v295 = vunpack.c.l.b16 %v224
    %v296 = vunpack.c.l.b16 %v225
    %v297 = vunpack.c.l.b16 %v226
    %v298 = vunpack.c.l.b16 %v227
    %v299 = vunpack.c.l.b16 %v228
    %v300 = vunpack.c.l.b16 %v229
    %v301 = vunpack.c.l.b16 %v230
    %v302 = vunpack.c.l.b16 %v231
    %v303 = vunpack.c.l.b16 %v232
    %v304 = vunpack.c.l.b16 %v233
    %v305 = vunpack.c.l.b16 %v234
    %v306 = vunpack.c.l.b16 %v235
    %v307 = vunpack.c.l.b16 %v236
    %v308 = vunpack.c.l.b16 %v237
    %v309 = vunpack.c.l.b16 %v238
    %v310 = vunpack.c.l.b16 %v239
    %v311 = vunpack.c.l.b16 %v240
    %v312 = vunpack.c.l.b16 %v241
    %v313 = vunpack.c.l.b16 %v242
    %v314 = vunpack.c.l.b16 %v243
    %v315 = vunpack.c.l.b16 %v244
    %v316 = vunpack.c.l.b16 %v245
    %v317 = vunpack.c.l.b16 %v246
    %v318 = vunpack.c.l.b16 %v247
    %v319 = vunpack.c.l.b16 %v248
    %v320 = vunpack.c.l.b16 %v249
    %v321 = vunpack.c.l.b16 %v250
    %v322 = vunpack.c.l.b16 %v251
    %v323 = vunpack.c.l.b16 %v252
    %v324 = vunpack.c.l.b16 %v253
    %v325 = vpack.c.b16 %v294, %v293
    %v326 = vpack.c.b16 %v296, %v295
    %v327 = vpack.c.b16 %v298, %v297
    %v328 = vpack.c.b16 %v300, %v299
    %v329 = vpack.c.b16 %v302, %v301
    %v330 = vpack.c.b16 %v304, %v303
    %v331 = vpack.c.b16 %v306, %v305
    %v332 = vpack.c.b16 %v308, %v307
    %v333 = vpack.c.b16 %v310, %v309
    %v334 = vpack.c.b16 %v312, %v311
    %v335 = vpack.c.b16 %v314, %v313
    %v336 = vpack.c.b16 %v316, %v315
    %v337 = vpack.c.b16 %v318, %v317
    %v338 = vpack.c.b16 %v320, %v319
    %v339 = vpack.c.b16 %v322, %v321
    %v340 = vpack.c.b16 %v324, %v323
    %357 = vmatprep.subr.bf16.mxu0 0
    %358 = vmatpush1.bf16.msra.mxu0 %v325
    %359 = vmatprep.subr.bf16.mxu0 0
    %360 = vmatpush1.bf16.msra.mxu0 %v326
    %361 = vmatprep.subr.bf16.mxu0 0
    %362 = vmatpush1.bf16.msra.mxu0 %v327
    %363 = vmatprep.subr.bf16.mxu0 0
    %364 = vmatpush1.bf16.msra.mxu0 %v328
    %365 = vmatprep.subr.bf16.mxu0 0
    %366 = vmatpush1.bf16.msra.mxu0 %v329
    %367 = vmatprep.subr.bf16.mxu0 0
    %368 = vmatpush1.bf16.msra.mxu0 %v330
    %369 = vmatprep.subr.bf16.mxu0 0
    %370 = vmatpush1.bf16.msra.mxu0 %v331
    %371 = vmatprep.subr.bf16.mxu0 0
    %372 = vmatpush1.bf16.msra.mxu0 %v332
    %373 = vmatprep.subr.bf16.mxu0 0
    %374 = vmatpush1.bf16.msra.mxu0 %v333
    %375 = vmatprep.subr.bf16.mxu0 0
    %376 = vmatpush1.bf16.msra.mxu0 %v334
    %377 = vmatprep.subr.bf16.mxu0 0
    %378 = vmatpush1.bf16.msra.mxu0 %v335
    %379 = vmatprep.subr.bf16.mxu0 0
    %380 = vmatpush1.bf16.msra.mxu0 %v336
    %381 = vmatprep.subr.bf16.mxu0 0
    %382 = vmatpush1.bf16.msra.mxu0 %v337
    %383 = vmatprep.subr.bf16.mxu0 0
    %384 = vmatpush1.bf16.msra.mxu0 %v338
    %385 = vmatprep.subr.bf16.mxu0 0
    %386 = vmatpush1.bf16.msra.mxu0 %v339
    %387 = vmatprep.subr.bf16.mxu0 0
    %388 = vmatpush1.bf16.msra.mxu0 %v340
    %389 = vmatprep.mubr.bf16.mxu0 %v221
    %390 = vmatmul.mubr.bf16.gmra.mrb[0].mxu0 %v220
    %v391 = vpop.f32.mrb[0].mxu0
    %v392 = vadd.f32 %v259, %v391
    %v393 = vpop.f32.mrb[0].mxu0
    %v394 = vpop.f32.mrb[0].mxu0
    %v395 = vpop.f32.mrb[0].mxu0
    %396 = vdwg.mxu0
    %v397 = vmax.f32 %v392, 0.0
    %v398 = vld [vmem:[%s5] sm:$0x1]
    %v400 = vlaneseq
    %v401 = vshrl.u32 %v400, 7
    %v402 = vsub.s32 0, %v401
    %v403 = vrot.slane %v398, %v402
    %v405 = vmul.f32 %v397, %v403
    %406 = vadd.xlane.f32.xlu0 %v405
    %v407 = vpop.xlane.xlu0 %406
    %v408 = vld [vmem:[#allocation2] sm:$0x1]
    %v410 = vlaneseq
    %v411 = vshrl.u32 %v410, 7
    %v412 = vsub.s32 0, %v411
    %v413 = vrot.slane %v408, %v412
    %v415 = vadd.f32 %v407, %v413
    %v416 = vxor.u32 %v415, 2147483648
    %v417 = vmul.f32 %v416, 1.442695
    %v418 = vpow.pop %v417
    %v419 = vadd.f32 %v418, 1.0
    %v420 = vrcp.pop %v419
    %v421 = vmul.f32 1.0, %v420
    %vm422 = vcmask 7168
    %423 = vst.msk [vmem:[%s7] sm:$0xff] %vm422, %v421
    // Predicated region
    $region42: #{tpu_custom_call.1} parent=1 // pred_check
      _
    $region43: #{tpu_custom_call.1} parent=1 // pred_check_branch
      %425 = sbr.rel (0) target = $region45
    $region44: #{tpu_custom_call.1} parent=1 // pred_region
      _
    $region45: #{tpu_custom_call.1} parent=1 // pred_fallthru
      _
    // Predicated region
    $region46: #{tpu_custom_call.1} parent=1 // pred_check
      _
    $region47: #{tpu_custom_call.1} parent=1 // pred_check_branch
      %427 = sbr.rel (0) target = $region49
    $region48: #{tpu_custom_call.1} parent=1 // pred_region
      _
    $region49: #{tpu_custom_call.1} parent=1 // pred_fallthru
      _
    %428 = vsyncpa [#allocation4], 1
    %429 = vsyncpa [#allocation6], 1

</llo_original>
